<compile_context>
chip_gen: v5e
topology: v5e:2x2
jax: 0.10.0
libtpu: 0.0.40
codegen_flags: <defaults>
</compile_context>

<pallas_src>
import jax
import jax.numpy as jnp
from jax.experimental import pallas as pl
from jax.experimental.pallas import tpu as pltpu

LANE_W = 128    # lane-dense last dim (full 128-lane vreg rows)
TILE_R = 1024   # rows per grid step; (1024,128) f32 = 512 KiB per tile


def _linreg_kernel(w_ref, b_ref, x_ref, o_ref):
    # w_ref / b_ref are SMEM scalars; x_ref / o_ref are (tile_r, 128) VMEM tiles.
    o_ref[...] = x_ref[...] * w_ref[0] + b_ref[0]


def linear_regression_forward(x, weight, bias):
    """y = x @ weight.T + bias  for weight (1,1), bias (1,), x (N,1)."""
    n, f = x.shape
    assert f == 1 and weight.shape == (1, 1) and bias.shape == (1,)
    dtype = x.dtype
    w_flat = weight.reshape((1,))  # (out=1, in=1) -> scalar in SMEM

    # --- lane-dense repack: (N,1) -> padded (rows_padded, 128) slab ---------
    flat = x.reshape((-1,))
    padded_len = pl.cdiv(n, LANE_W) * LANE_W
    rows = padded_len // LANE_W
    if rows > TILE_R:
        rows_padded = pl.cdiv(rows, TILE_R) * TILE_R   # tile the row axis
        tile_r = TILE_R
    else:
        rows_padded = pl.cdiv(rows, 8) * 8             # sublane-align, single tile
        tile_r = rows_padded
    total = rows_padded * LANE_W
    if total != n:
        flat = jnp.pad(flat, (0, total - n))
    x2d = flat.reshape((rows_padded, LANE_W))

    grid = (rows_padded // tile_r,)
    out2d = pl.pallas_call(
        _linreg_kernel,
        out_shape=jax.ShapeDtypeStruct((rows_padded, LANE_W), dtype),
        grid=grid,
        in_specs=[
            pl.BlockSpec(memory_space=pltpu.MemorySpace.SMEM),   # weight scalar
            pl.BlockSpec(memory_space=pltpu.MemorySpace.SMEM),   # bias scalar
            pl.BlockSpec((tile_r, LANE_W), lambda i: (i, 0)),    # x tile
        ],
        out_specs=pl.BlockSpec((tile_r, LANE_W), lambda i: (i, 0)),
        compiler_params=pltpu.CompilerParams(
            dimension_semantics=("parallel",),
        ),
    )(w_flat, bias, x2d)

    # Drop padding and restore the (N, 1) layout of nn.Linear's output.
    return out2d.reshape((-1,))[:n].reshape((n, 1))


if __name__ == "__main__":
    key = jax.random.PRNGKey(0)
    kx, kw, kb = jax.random.split(key, 3)

    # Small batch of scalar inputs, matching nn.Linear(1, 1).
    # N = 300 deliberately not a multiple of 128 to exercise the padding path.
    n = 300
    x = jax.random.normal(kx, (n, 1), dtype=jnp.float32)

    # Deterministic parameter init (exact init values don't matter for the
    # kernel's forward semantics).
    weight = jax.random.uniform(kw, (1, 1), dtype=jnp.float32, minval=-1.0, maxval=1.0)
    bias = jax.random.uniform(kb, (1,), dtype=jnp.float32, minval=-1.0, maxval=1.0)

    y = linear_regression_forward(x, weight, bias)
    y = jax.block_until_ready(y)

    # Reference check against plain JAX (same math as nn.Linear forward).
    y_ref = x @ weight.T + bias
    assert y.shape == (n, 1)
    assert jnp.allclose(y, y_ref, atol=1e-6), "mismatch vs reference"

    print("KERNEL_OK")
</pallas_src>

<mosaic_0001>
module attributes {stable_mosaic.version = 11 : i64} {
  func.func @_linreg_kernel(%arg0: i32, %arg1: memref<1xf32, #tpu.memory_space<smem>>, %arg2: memref<1xf32, #tpu.memory_space<smem>>, %arg3: memref<8x128xf32, #tpu.memory_space<vmem>>, %arg4: memref<8x128xf32, #tpu.memory_space<vmem>>) attributes {dimension_semantics = [#tpu.dimension_semantics<parallel>], iteration_bounds = array<i64: 1>, scalar_prefetch = 0 : i64, scratch_operands = 0 : i64, tpu.core_type = #tpu.core_type<tc>, window_params = [{transform_indices = @transform_0, window_bounds = array<i64: 1>}, {transform_indices = @transform_1, window_bounds = array<i64: 1>}, {transform_indices = @transform_2, window_bounds = array<i64: 8, 128>}, {transform_indices = @transform_3, window_bounds = array<i64: 8, 128>}]} {
    %c0 = arith.constant 0 : index
    %c0_0 = arith.constant 0 : index
    %0 = vector.load %arg3[%c0, %c0_0] : memref<8x128xf32, #tpu.memory_space<vmem>>, vector<8x128xf32>
    %c0_1 = arith.constant 0 : index
    %1 = memref.load %arg1[%c0_1] : memref<1xf32, #tpu.memory_space<smem>>
    %2 = vector.broadcast %1 : f32 to vector<8x128xf32>
    %3 = arith.mulf %0, %2 : vector<8x128xf32>
    %c0_2 = arith.constant 0 : index
    %4 = memref.load %arg2[%c0_2] : memref<1xf32, #tpu.memory_space<smem>>
    %5 = vector.broadcast %4 : f32 to vector<8x128xf32>
    %6 = arith.addf %3, %5 : vector<8x128xf32>
    %c0_3 = arith.constant 0 : index
    %c0_4 = arith.constant 0 : index
    %7 = vector.load %arg4[%c0_3, %c0_4] : memref<8x128xf32, #tpu.memory_space<vmem>>, vector<8x128xf32>
    tpu.vector_store %arg4[%c0_3, %c0_4], %6 {strides = array<i32>} : memref<8x128xf32, #tpu.memory_space<vmem>>, vector<8x128xf32>,
    return
  }
  func.func @transform_0(%arg0: i32) -> i32 {
    %c0_i32 = arith.constant 0 : i32
    %c0_i32_0 = arith.constant 0 : i32
    return %c0_i32 : i32
  }
  func.func @transform_1(%arg0: i32) -> i32 {
    %c0_i32 = arith.constant 0 : i32
    %c0_i32_0 = arith.constant 0 : i32
    return %c0_i32 : i32
  }
  func.func @transform_2(%arg0: i32) -> (i32, i32) {
    %c0_i32 = arith.constant 0 : i32
    %c0_i32_0 = arith.constant 0 : i32
    return %arg0, %c0_i32 : i32, i32
  }
  func.func @transform_3(%arg0: i32) -> (i32, i32) {
    %c0_i32 = arith.constant 0 : i32
    %c0_i32_0 = arith.constant 0 : i32
    return %arg0, %c0_i32 : i32, i32
  }
}

</mosaic_0001>

<llo_original>
// kernel: tpu_custom_call.1
$region0: #{tpu_custom_call.1}
  #allocation0 [shape = 'u32[]', space=smem, size = 0x4, offset = 0x4, fixed_abs, tag = 'smem constant byte address 0x4 - core index']
  #allocation1 [shape = 'u32[72,128]{1,0:T(1,128)}', space=vmem, size = 0x9000, scoped, tag = 'internal scratch']
  #allocation2 [shape = 'f32[1]{0:T(128)S(6)}', space=smem, size = 0x200, scoped, tag = 'scoped memory for tpu_custom_call.1']
  #allocation3 [shape = 'f32[1]{0:T(128)S(6)}', space=smem, size = 0x200, scoped, tag = 'scoped memory for tpu_custom_call.1']
  %s0 = inlined_call_operand.<no memory space> [shape: f32[1], index: 0, kind: input, shape index: {}]
  %s1 = inlined_call_operand.<no memory space> [shape: f32[1], index: 1, kind: input, shape index: {}]
  %s2 = inlined_call_operand.hbm [shape: f32[8,128], index: 2, kind: input, shape index: {}]
  %s3 = inlined_call_operand.hbm [shape: f32[8,128], index: 3, kind: output, shape index: {}]
  %s4 = sld [smem:[#allocation0]]
  $region26: #{tpu_custom_call.1} parent=0
    _
  %s6 = ssub.s32 1, %s4
  %s7 = scalar_select 0, %s6, %s4
  %8 = sst [smem:[#allocation2]] %s0
  %9 = sst [smem:[#allocation3]] %s1
  $region1: #{tpu_custom_call.1} parent=0
    #allocation4 [shape = 'u8[4096]{0}', space=vmem, size = 0x1000, scoped, tag = 'input window, operand 2, single buffered']
    #allocation5 [shape = 's32[1]{0}', space=sflag, size = 0x4, scoped, tag = 'scoped memory for tpu_custom_call.1']
    #allocation6 [shape = 's32[1]{0}', space=sflag, size = 0x4, scoped, tag = 'scoped memory for tpu_custom_call.1']
    #allocation7 [shape = 'u8[4096]{0}', space=vmem, size = 0x1000, scoped, tag = 'output window, operand 0, single buffered']
    %10 = vsyncpa [#allocation5], 0
    %11 = vsyncpa [#allocation6], 0
    // Predicated region
    $region2: #{tpu_custom_call.1} parent=1 // pred_check
      _
    $region3: #{tpu_custom_call.1} parent=1 // pred_check_branch
      %13 = sbr.rel (0) target = $region5
    $region4: #{tpu_custom_call.1} parent=1 // pred_region
      _
    $region5: #{tpu_custom_call.1} parent=1 // pred_fallthru
      _
    // Predicated region
    $region6: #{tpu_custom_call.1} parent=1 // pred_check
      _
    $region7: #{tpu_custom_call.1} parent=1 // pred_check_branch
      %15 = sbr.rel (0) target = $region9
    $region8: #{tpu_custom_call.1} parent=1 // pred_region
      _
    $region9: #{tpu_custom_call.1} parent=1 // pred_fallthru
      _
    // Predicated region
    $region10: #{tpu_custom_call.1} parent=1 // pred_check
      _
    $region11: #{tpu_custom_call.1} parent=1 // pred_check_branch
      %17 = sbr.rel (0) target = $region13
    $region12: #{tpu_custom_call.1} parent=1 // pred_region
      %19 = vsyncadd [#allocation5], 0
      %s21 = sshll.u32 %s2, 4
      %s22 = int_to_ptr.hbm [resolvable:$true] %s21
      %s23 = sshll.u32 [#allocation4], 4
      %s24 = int_to_ptr.vmem [resolvable:$true] %s23
      %26 = dma.hbm_to_vmem [thread:$0]  %s22, 128, %s24, [#allocation5]
    $region13: #{tpu_custom_call.1} parent=1 // pred_fallthru
      _
    // Predicated region
    $region14: #{tpu_custom_call.1} parent=1 // pred_check
      _
    $region15: #{tpu_custom_call.1} parent=1 // pred_check_branch
      %28 = sbr.rel (0) target = $region17
    $region16: #{tpu_custom_call.1} parent=1 // pred_region
      %30 = dma.done [#allocation5], 128
    $region17: #{tpu_custom_call.1} parent=1 // pred_fallthru
      _
    %v31 = vld [vmem:[#allocation4] sm:$0xff]
    %s32 = sld [smem:[#allocation2]]
    %v33 = vstv %s32
    %v34 = vmul.f32 %v31, %v33
    %s35 = sld [smem:[#allocation3]]
    %v36 = vstv %s35
    %v37 = vadd.f32 %v34, %v36
    %38 = vst [vmem:[#allocation7] sm:$0xff] %v37
    // Predicated region
    $region18: #{tpu_custom_call.1} parent=1 // pred_check
      _
    $region19: #{tpu_custom_call.1} parent=1 // pred_check_branch
      %40 = sbr.rel (0) target = $region21
    $region20: #{tpu_custom_call.1} parent=1 // pred_region
      %42 = vsyncadd [#allocation6], 0
      %s44 = sshll.u32 [#allocation7], 4
      %s45 = int_to_ptr.vmem [resolvable:$true] %s44
      %s46 = sshll.u32 %s3, 4
      %s47 = int_to_ptr.hbm [resolvable:$true] %s46
      %49 = dma.vmem_to_hbm [thread:$0]  %s45, 128, %s47, [#allocation6]
    $region21: #{tpu_custom_call.1} parent=1 // pred_fallthru
      _
    // Predicated region
    $region22: #{tpu_custom_call.1} parent=1 // pred_check
      _
    $region23: #{tpu_custom_call.1} parent=1 // pred_check_branch
      %51 = sbr.rel (0) target = $region25
    $region24: #{tpu_custom_call.1} parent=1 // pred_region
      %53 = dma.done [#allocation6], 128
    $region25: #{tpu_custom_call.1} parent=1 // pred_fallthru
      _
    %54 = vsyncpa [#allocation5], 1
    %55 = vsyncpa [#allocation6], 1

</llo_original>
